<compile_context>
chip_gen: v7x
topology: tpu7x:2x2x1
jax: 0.10.0
libtpu: 0.0.40
codegen_flags: <defaults>
</compile_context>

<pallas_src>
import jax
import jax.numpy as jnp
from jax.experimental import pallas as pl
from jax.experimental.pallas import tpu as pltpu


def moe_kernel(x_ref, w_ref, b_ref, gw_ref,   # inputs
               out_ref,                        # output
               acc_ref):                       # scratch
    # x_ref   : (B, TK)     activations (bf16), k-th D tile
    # w_ref   : (TK, E*TC)  fused expert weights for output-channel block n (bf16)
    # b_ref   : (1, E*TC)   fused expert biases for block n (f32)
    # gw_ref  : (B, E)      gating softmax weights (f32), computed in the wrapper
    # out_ref : (B, TC)     weighted output, channel block n
    # acc_ref : (B, E*TC)   f32 expert accumulator (scratch, persists across k)
    k = pl.program_id(1)
    k_last = pl.num_programs(1) - 1

    @pl.when(k == 0)
    def _init():
        acc_ref[...] = jnp.zeros_like(acc_ref)

    # One fused MXU matmul for all E experts per K tile (f32 accumulation).
    acc_ref[...] += jnp.dot(x_ref[...], w_ref[...], preferred_element_type=jnp.float32)

    @pl.when(k == k_last)
    def _finalize():
        num_experts = gw_ref.shape[-1]
        tc = out_ref.shape[-1]

        # Bias add + gating-weighted combine (einsum 'bn,bcn->bc'), only at finalize.
        y = acc_ref[...] + b_ref[...]                         # (B, E*TC)
        gw = gw_ref[...]                                      # (B, E)
        out = gw[:, 0:1] * y[:, 0:tc]
        for ei in range(1, num_experts):
            out = out + gw[:, ei:ei + 1] * y[:, ei * tc:(ei + 1) * tc]
        out_ref[...] = out.astype(out_ref.dtype)


def _largest_div_multiple(n, m, cap):
    """Largest divisor of n that is a multiple of m and <= cap; falls back to n (full extent)."""
    cap = min(cap, n)
    d = (cap // m) * m
    while d >= m:
        if n % d == 0:
            return d
        d -= m
    return n


def _tpu_defaults(D, C):
    """Generation-aware default (tk, tc, vmem_limit_bytes)."""
    kind = ""
    try:
        kind = jax.devices()[0].device_kind.lower()
    except Exception:
        pass
    if "v5" in kind or "v6" in kind:
        # Single TensorCore, 128 MiB physical VMEM: collapse the channel grid, big K tiles.
        tc = C
        tk = _largest_div_multiple(D, 128, 16000)
        vmem = 96 * 1024 * 1024
    else:
        # v7x (64 MiB VMEM / TC, 2 TCs) and conservative fallback: keep the channel grid
        # for the megacore split and stay well under the scoped-VMEM ceiling.
        tc = _largest_div_multiple(C, 128, 128)
        tk = _largest_div_multiple(D, 128, 9600)
        vmem = 48 * 1024 * 1024
    return tk, tc, vmem


def classic_moe_forward(x, w_experts, b_experts, w_gate, b_gate, *,
                        tk=None, tc=None, weight_dtype=jnp.bfloat16,
                        vmem_limit_bytes=None):
    """x: (B, D) f32; w_experts: (E, D, C); b_experts: (E, C); w_gate: (D, E); b_gate: (E,).

    Expert / gating weights are given pre-transposed (x @ W layout).  Returns
    (weighted_output (B, C) f32, gating_weights (B, E) f32).
    """
    B, D = x.shape
    E, D2, C = w_experts.shape
    assert D2 == D

    # ---- Gating path in plain f32 JAX (tiny matmul), outside the Pallas kernel. ----
    gw = jax.nn.softmax(x @ w_gate + b_gate, axis=-1).astype(jnp.float32)   # (B, E)

    auto_tk, auto_tc, auto_vmem = _tpu_defaults(D, C)
    if tk is None:
        tk = auto_tk
    if tc is None:
        tc = auto_tc
    if vmem_limit_bytes is None:
        vmem_limit_bytes = auto_vmem
    tk = min(tk, D)
    tc = min(tc, C)
    assert D % tk == 0 and C % tc == 0, "tile sizes must divide D and C"

    wbytes = jnp.dtype(weight_dtype).itemsize

    # Safety: shrink tk if double-buffered weight blocks would blow the VMEM budget.
    budget = int(vmem_limit_bytes * 0.75)
    while 2 * tk * E * tc * wbytes > budget:
        nxt = None
        d = tk - 128
        while d >= 128:
            if D % d == 0:
                nxt = d
                break
            d -= 128
        if nxt is None:
            break
        tk = nxt

    nk = D // tk
    nc = C // tc

    # Fused expert weights: (E,D,C) -> (D, nc, E, TC) -> (D, nc*E*TC): each output-channel
    # block n holds, contiguously, all E experts for channels [n*TC, (n+1)*TC).
    w_f = jnp.transpose(w_experts, (1, 0, 2)).reshape(D, E, nc, tc)
    w_f = jnp.transpose(w_f, (0, 2, 1, 3)).reshape(D, nc * E * tc).astype(weight_dtype)

    # Matching permutation for the expert biases (added only in the finalize step).
    b_f = jnp.transpose(b_experts.reshape(E, nc, tc), (1, 0, 2))
    b_f = b_f.reshape(1, nc * E * tc).astype(jnp.float32)

    # Pre-cast activations once in the wrapper (halves x HBM bytes; no per-step cast).
    x_lp = x.astype(weight_dtype)

    cost = pl.CostEstimate(
        flops=2 * B * D * E * C,
        transcendentals=0,
        bytes_accessed=D * E * C * wbytes          # expert weights (streamed once)
        + nc * B * D * wbytes                      # x (re-fetched once per channel block)
        + B * C * 4 + nc * B * E * 4 + E * C * 4,  # out, gw, biases
    )

    grid = (nc, nk)  # (output-channel blocks [parallel], D-reduction tiles [arbitrary, last])

    out = pl.pallas_call(
        moe_kernel,
        out_shape=jax.ShapeDtypeStruct((B, C), jnp.float32),
        grid_spec=pltpu.PrefetchScalarGridSpec(
            num_scalar_prefetch=0,
            grid=grid,
            in_specs=[
                pl.BlockSpec((B, tk), lambda n, k: (0, k)),        # x (bf16)
                pl.BlockSpec((tk, E * tc), lambda n, k: (k, n)),   # fused expert weights
                pl.BlockSpec((1, E * tc), lambda n, k: (0, n)),    # fused expert biases
                pl.BlockSpec((B, E), lambda n, k: (0, 0)),         # gating weights (f32)
            ],
            out_specs=pl.BlockSpec((B, tc), lambda n, k: (0, n)),
            scratch_shapes=[
                pltpu.VMEM((B, E * tc), jnp.float32),   # expert accumulator
            ],
        ),
        compiler_params=pltpu.CompilerParams(
            dimension_semantics=("parallel", "arbitrary"),
            vmem_limit_bytes=vmem_limit_bytes,
        ),
        cost_estimate=cost,
    )(x_lp, w_f, b_f, gw)

    return out, gw


def reference_forward(x, w_experts, b_experts, w_gate, b_gate):
    # Pure-JAX reference mirroring the PyTorch module.
    E = w_experts.shape[0]
    expert_outputs = jnp.stack(
        [x @ w_experts[e] + b_experts[e] for e in range(E)], axis=-1)  # (B, C, E)
    logits = x @ w_gate + b_gate
    gw = jax.nn.softmax(logits, axis=-1)
    out = jnp.einsum('bn,bcn->bc', gw, expert_outputs)
    return out, gw


if __name__ == "__main__":
    # Small shapes consistent with the module (input_dim 48000 shrunk to 1024 for the test);
    # tiles chosen so both grid axes are exercised: grid = (C//TC, D//TK) = (2, 4).
    B, D, C, E = 8, 1024, 256, 4
    TK, TC = 256, 128

    key = jax.random.PRNGKey(0)
    kx, kwe, kbe, kwg, kbg = jax.random.split(key, 5)

    x = jax.random.normal(kx, (B, D), dtype=jnp.float32)
    w_experts = jax.random.normal(kwe, (E, D, C), dtype=jnp.float32) * (1.0 / float(D) ** 0.5)
    b_experts = jax.random.normal(kbe, (E, C), dtype=jnp.float32) * 0.02
    w_gate = jax.random.normal(kwg, (D, E), dtype=jnp.float32) * (1.0 / float(D) ** 0.5)
    b_gate = jax.random.normal(kbg, (E,), dtype=jnp.float32) * 0.02

    out, gw = classic_moe_forward(x, w_experts, b_experts, w_gate, b_gate, tk=TK, tc=TC)
    jax.block_until_ready((out, gw))

    # Check 1 (tight): expert path compared against a reference that uses the same bf16-rounded
    # x / expert weights the kernel sees, combined with the exact f32 gating -- validates the
    # tiling / fusion / channel-permutation logic.
    q = lambda a: a.astype(jnp.bfloat16).astype(jnp.float32)
    eo_q = jnp.stack([q(x) @ q(w_experts[e]) + b_experts[e] for e in range(E)], axis=-1)
    ref_gw = jax.nn.softmax(x @ w_gate + b_gate, axis=-1)
    ref_out_q = jnp.einsum('bn,bcn->bc', ref_gw, eo_q)
    assert jnp.allclose(gw, ref_gw, atol=1e-5, rtol=1e-5), \
        f"gw mismatch (f32 gating): {float(jnp.max(jnp.abs(gw - ref_gw)))}"
    assert jnp.allclose(out, ref_out_q, atol=2e-2, rtol=2e-2), \
        f"out mismatch (quantized ref): {float(jnp.max(jnp.abs(out - ref_out_q)))}"

    # Check 2 (loose): against exact f32 module semantics (kernel expert weights are bf16).
    ref_out, ref_gw_f32 = reference_forward(x, w_experts, b_experts, w_gate, b_gate)
    assert jnp.allclose(out, ref_out, atol=1e-1, rtol=1e-1), \
        f"out mismatch (f32 ref): {float(jnp.max(jnp.abs(out - ref_out)))}"
    assert jnp.allclose(gw, ref_gw_f32, atol=1e-5, rtol=1e-5), \
        f"gw mismatch (f32 ref): {float(jnp.max(jnp.abs(gw - ref_gw_f32)))}"

    # Check 3: device-aware default tiling path (auto tk/tc/vmem) produces the same result.
    out_auto, gw_auto = classic_moe_forward(x, w_experts, b_experts, w_gate, b_gate)
    jax.block_until_ready((out_auto, gw_auto))
    assert jnp.allclose(out_auto, out, atol=2e-2, rtol=2e-2), \
        f"auto-tile mismatch: {float(jnp.max(jnp.abs(out_auto - out)))}"
    assert jnp.allclose(gw_auto, gw, atol=1e-6, rtol=1e-6)

    print("KERNEL_OK")
</pallas_src>

<mosaic_0001>
module attributes {stable_mosaic.version = 11 : i64} {
  func.func @moe_kernel(%arg0: i32, %arg1: i32, %arg2: memref<8x256xbf16, #tpu.memory_space<vmem>>, %arg3: memref<256x512xbf16, #tpu.memory_space<vmem>>, %arg4: memref<1x512xf32, #tpu.memory_space<vmem>>, %arg5: memref<8x4xf32, #tpu.memory_space<vmem>>, %arg6: memref<8x128xf32, #tpu.memory_space<vmem>>, %arg7: memref<8x512xf32, #tpu.memory_space<vmem>>) attributes {dimension_semantics = [#tpu.dimension_semantics<parallel>, #tpu.dimension_semantics<arbitrary>], iteration_bounds = array<i64: 2, 4>, scalar_prefetch = 0 : i64, scratch_operands = 1 : i64, tpu.core_type = #tpu.core_type<tc>, window_params = [{transform_indices = @transform_0, window_bounds = array<i64: 8, 256>}, {transform_indices = @transform_1, window_bounds = array<i64: 256, 512>}, {transform_indices = @transform_2, window_bounds = array<i64: 1, 512>}, {pipeline_mode = #tpu.pipeline_mode<synchronous>, transform_indices = @transform_3, window_bounds = array<i64: 8, 4>}, {transform_indices = @transform_4, window_bounds = array<i64: 8, 128>}]} {
    %c0_i32 = arith.constant 0 : i32
    %0 = arith.cmpi eq, %arg1, %c0_i32 : i32
    %1 = arith.extui %0 : i1 to i32
    %c0_i32_0 = arith.constant 0 : i32
    %2 = arith.cmpi ne, %1, %c0_i32_0 : i32
    scf.if %2 {
      %cst_9 = arith.constant 0.000000e+00 : f32
      %12 = vector.broadcast %cst_9 : f32 to vector<8x512xf32>
      %c0_10 = arith.constant 0 : index
      %c0_11 = arith.constant 0 : index
      %13 = vector.load %arg7[%c0_10, %c0_11] : memref<8x512xf32, #tpu.memory_space<vmem>>, vector<8x512xf32>
      tpu.vector_store %arg7[%c0_10, %c0_11], %12 {strides = array<i32>} : memref<8x512xf32, #tpu.memory_space<vmem>>, vector<8x512xf32>,
    } else {
    }
    %c0 = arith.constant 0 : index
    %c0_1 = arith.constant 0 : index
    %3 = vector.load %arg7[%c0, %c0_1] : memref<8x512xf32, #tpu.memory_space<vmem>>, vector<8x512xf32>
    %c0_2 = arith.constant 0 : index
    %c0_3 = arith.constant 0 : index
    %4 = vector.load %arg2[%c0_2, %c0_3] : memref<8x256xbf16, #tpu.memory_space<vmem>>, vector<8x256xbf16>
    %c0_4 = arith.constant 0 : index
    %c0_5 = arith.constant 0 : index
    %5 = vector.load %arg3[%c0_4, %c0_5] : memref<256x512xbf16, #tpu.memory_space<vmem>>, vector<256x512xbf16>
    %cst = arith.constant dense<0.000000e+00> : vector<8x512xf32>
    %6 = tpu.matmul %4, %5, %cst {dimension_numbers = #tpu.dot_dimension_numbers<[1], [0], [0], [1], [0, 0, 1, 1], [], []>} : vector<8x256xbf16>, vector<256x512xbf16>, vector<8x512xf32> -> vector<8x512xf32>
    %7 = arith.addf %3, %6 : vector<8x512xf32>
    %c0_6 = arith.constant 0 : index
    %c0_7 = arith.constant 0 : index
    %8 = vector.load %arg7[%c0_6, %c0_7] : memref<8x512xf32, #tpu.memory_space<vmem>>, vector<8x512xf32>
    tpu.vector_store %arg7[%c0_6, %c0_7], %7 {strides = array<i32>} : memref<8x512xf32, #tpu.memory_space<vmem>>, vector<8x512xf32>,
    %c3_i32 = arith.constant 3 : i32
    %9 = arith.cmpi eq, %arg1, %c3_i32 : i32
    %10 = arith.extui %9 : i1 to i32
    %c0_i32_8 = arith.constant 0 : i32
    %11 = arith.cmpi ne, %10, %c0_i32_8 : i32
    scf.if %11 {
      %c0_9 = arith.constant 0 : index
      %c0_10 = arith.constant 0 : index
      %12 = vector.load %arg7[%c0_9, %c0_10] : memref<8x512xf32, #tpu.memory_space<vmem>>, vector<8x512xf32>
      %c0_11 = arith.constant 0 : index
      %c0_12 = arith.constant 0 : index
      %13 = vector.load %arg4[%c0_11, %c0_12] : memref<1x512xf32, #tpu.memory_space<vmem>>, vector<1x512xf32>
      %14 = vector.broadcast %13 : vector<1x512xf32> to vector<8x512xf32>
      %15 = arith.addf %12, %14 : vector<8x512xf32>
      %c0_13 = arith.constant 0 : index
      %c0_14 = arith.constant 0 : index
      %16 = vector.load %arg5[%c0_13, %c0_14] : memref<8x4xf32, #tpu.memory_space<vmem>>, vector<8x4xf32>
      %17 = vector.extract_strided_slice %16 {offsets = [0, 0], sizes = [8, 1], strides = [1, 1]} : vector<8x4xf32> to vector<8x1xf32>
      %18 = vector.extract_strided_slice %15 {offsets = [0, 0], sizes = [8, 128], strides = [1, 1]} : vector<8x512xf32> to vector<8x128xf32>
      %19 = vector.broadcast %17 : vector<8x1xf32> to vector<8x128xf32>
      %20 = arith.mulf %19, %18 : vector<8x128xf32>
      %21 = vector.extract_strided_slice %16 {offsets = [0, 1], sizes = [8, 1], strides = [1, 1]} : vector<8x4xf32> to vector<8x1xf32>
      %22 = vector.extract_strided_slice %15 {offsets = [0, 128], sizes = [8, 128], strides = [1, 1]} : vector<8x512xf32> to vector<8x128xf32>
      %23 = vector.broadcast %21 : vector<8x1xf32> to vector<8x128xf32>
      %24 = arith.mulf %23, %22 : vector<8x128xf32>
      %25 = arith.addf %20, %24 : vector<8x128xf32>
      %26 = vector.extract_strided_slice %16 {offsets = [0, 2], sizes = [8, 1], strides = [1, 1]} : vector<8x4xf32> to vector<8x1xf32>
      %27 = vector.extract_strided_slice %15 {offsets = [0, 256], sizes = [8, 128], strides = [1, 1]} : vector<8x512xf32> to vector<8x128xf32>
      %28 = vector.broadcast %26 : vector<8x1xf32> to vector<8x128xf32>
      %29 = arith.mulf %28, %27 : vector<8x128xf32>
      %30 = arith.addf %25, %29 : vector<8x128xf32>
      %31 = vector.extract_strided_slice %16 {offsets = [0, 3], sizes = [8, 1], strides = [1, 1]} : vector<8x4xf32> to vector<8x1xf32>
      %32 = vector.extract_strided_slice %15 {offsets = [0, 384], sizes = [8, 128], strides = [1, 1]} : vector<8x512xf32> to vector<8x128xf32>
      %33 = vector.broadcast %31 : vector<8x1xf32> to vector<8x128xf32>
      %34 = arith.mulf %33, %32 : vector<8x128xf32>
      %35 = arith.addf %30, %34 : vector<8x128xf32>
      %c0_15 = arith.constant 0 : index
      %c0_16 = arith.constant 0 : index
      %36 = vector.load %arg6[%c0_15, %c0_16] : memref<8x128xf32, #tpu.memory_space<vmem>>, vector<8x128xf32>
      tpu.vector_store %arg6[%c0_15, %c0_16], %35 {strides = array<i32>} : memref<8x128xf32, #tpu.memory_space<vmem>>, vector<8x128xf32>,
    } else {
    }
    return
  }
  func.func @transform_0(%arg0: i32, %arg1: i32) -> (i32, i32) {
    %c0_i32 = arith.constant 0 : i32
    %c0_i32_0 = arith.constant 0 : i32
    return %c0_i32, %arg1 : i32, i32
  }
  func.func @transform_1(%arg0: i32, %arg1: i32) -> (i32, i32) {
    %c0_i32 = arith.constant 0 : i32
    return %arg1, %arg0 : i32, i32
  }
  func.func @transform_2(%arg0: i32, %arg1: i32) -> (i32, i32) {
    %c0_i32 = arith.constant 0 : i32
    %c0_i32_0 = arith.constant 0 : i32
    return %c0_i32, %arg0 : i32, i32
  }
  func.func @transform_3(%arg0: i32, %arg1: i32) -> (i32, i32) {
    %c0_i32 = arith.constant 0 : i32
    %c0_i32_0 = arith.constant 0 : i32
    %c0_i32_1 = arith.constant 0 : i32
    return %c0_i32, %c0_i32_0 : i32, i32
  }
  func.func @transform_4(%arg0: i32, %arg1: i32) -> (i32, i32) {
    %c0_i32 = arith.constant 0 : i32
    %c0_i32_0 = arith.constant 0 : i32
    return %c0_i32, %arg0 : i32, i32
  }
}

</mosaic_0001>

<llo_original>
// kernel: tpu_custom_call.1
$region0: #{tpu_custom_call.1}
  #allocation0 [shape = 'u32[]', space=smem, size = 0x4, offset = 0x4, fixed_abs, tag = 'smem constant byte address 0x4 - core index']
  #allocation1 [shape = 'u32[144,128]{1,0:T(1,128)}', space=vmem, size = 0x12000, scoped, tag = 'internal scratch']
  #allocation2 [shape = 'f32[8,512]{1,0:T(8,128)}', space=vmem, size = 0x4000, scoped, tag = 'scratch operand']
  %s0 = inlined_call_operand.hbm [shape: bf16[8,1024], index: 0, kind: input, shape index: {}]
  %s1 = inlined_call_operand.hbm [shape: bf16[1024,1024], index: 1, kind: input, shape index: {}]
  %s2 = inlined_call_operand.hbm [shape: f32[1,1024], index: 2, kind: input, shape index: {}]
  %s3 = inlined_call_operand.vmem [shape: f32[8,4], index: 3, kind: input, shape index: {}]
  %s4 = inlined_call_operand.hbm [shape: f32[8,256], index: 4, kind: output, shape index: {}]
  %s5 = sld [smem:[#allocation0]]
  $region69: #{tpu_custom_call.1} parent=0
    _
  %s7 = ssub.s32 1, %s5
  %s8 = scalar_select 0, %s7, %s5
  $region1: #{tpu_custom_call.1} parent=0
    #allocation3 [shape = 'u8[8192]{0}', space=vmem, size = 0x2000, scoped, tag = 'input window, operand 0']
    #allocation4 [shape = 's32[2]{0}', space=sflag, size = 0x8, scoped, tag = 'scoped memory for tpu_custom_call.1']
    #allocation5 [shape = 's32[2]{0}', space=sflag, size = 0x8, scoped, tag = 'scoped memory for tpu_custom_call.1']
    #allocation6 [shape = 'u8[524288]{0}', space=vmem, size = 0x80000, scoped, tag = 'input window, operand 1']
    #allocation7 [shape = 's32[2]{0}', space=sflag, size = 0x8, scoped, tag = 'scoped memory for tpu_custom_call.1']
    #allocation8 [shape = 'u8[4096]{0}', space=vmem, size = 0x1000, scoped, tag = 'input window, operand 2']
    #allocation9 [shape = 'u8[8192]{0}', space=vmem, size = 0x2000, scoped, tag = 'output window, operand 0']
    %9 = vsyncpa [#allocation4], 0
    %s10 = scalar_lea.sflag [#allocation4], 1
    %11 = vsyncpa %s10, 0
    %12 = vsyncpa [#allocation7], 0
    %s13 = scalar_lea.sflag [#allocation7], 1
    %14 = vsyncpa %s13, 0
    %15 = vsyncpa [#allocation5], 0
    %s16 = scalar_lea.sflag [#allocation5], 1
    %17 = vsyncpa %s16, 0
    loop: start=0, step=1, limit=10
    $region2: #{tpu_custom_call.1} parent=1 // loop_pre_header
      _
    $region3: #{tpu_custom_call.1} parent=1 // loop_header
      %s19 = sphi 0, %s23
      %p20 = scmp.ge.s32.totalorder %s19, 10
      %s26 = sphi 0, %s38
      %s27 = sphi 0, %s34
      %s28 = sphi 0, %s26
      %s29 = sphi 0, %s27
      %s30 = sphi 0, %s28
      %s31 = sphi 0, %s29
      %s41 = sphi 0, %s43
      %s44 = sphi 0, %s41
      %s45 = sphi 0, %s44
      %s61 = sphi 0, %s45
      %s69 = sphi 0, %s71
      %s72 = sphi 0, %s69
      %s73 = sphi 0, %s72
      %s89 = sphi 0, %s73
      %s95 = sphi 0, %s97
      %s98 = sphi 0, %s95
      %s99 = sphi 0, %s98
      %s115 = sphi 0, %s99
      %s119 = sphi 0, %s119
      %s121 = sphi 0, %s119
      %s122 = sphi 0, %s121
      %s136 = sphi 0, %s122
      %s142 = sphi 0, %s144
      %s145 = sphi 0, %s142
      %s146 = sphi 0, %s145
      %s162 = sphi 0, %s146
    $region4: #{tpu_custom_call.1} parent=1 // loop_header_branch
      %22 = sbr.rel (%p20) target = $region8
    $region5: #{tpu_custom_call.1} parent=1 // loop_body
      %s24 = ssub.s32 %s19, 1
      %s25 = ssub.s32 %s19, 2
      %s32 = sadd.s32 1, %s27
      %p33 = scmp.ge.s32.totalorder %s32, 4
      %s34 = scalar_select %p33, 0, %s32
      %s35 = sadd.s32 1, %s26
      %s36 = scalar_select %p33, %s35, %s26
      %p37 = scmp.ge.s32.totalorder %s36, 2
      %s38 = scalar_select %p37, 0, %s36
      %s39 = ssub.s32 %s27, %s34
      %p40 = scmp.eq.s32.totalorder %s39, 0
      %s42 = sadd.s32 %s41, 1
      %s43 = scalar_select %p40, %s41, %s42
      %p46 = pneg %p40
      %p47 = scmp.eq.s32.totalorder %s19, 7
      %p48 = por %p46, %p47
      %p49 = scmp.ne.s32.totalorder %s41, %s44
      %p50 = scmp.eq.s32.totalorder %s19, 0
      %p51 = por %p49, %p50
      %p52 = scmp.ne.s32.totalorder %s41, %s44
      %p53 = scmp.eq.s32.totalorder %s24, 7
      %p54 = por %p52, %p53
      %p55 = scmp.ne.s32.totalorder %s44, %s45
      %p56 = scmp.eq.s32.totalorder %s24, 0
      %p57 = por %p55, %p56
      %p58 = scmp.ne.s32.totalorder %s44, %s45
      %p59 = scmp.eq.s32.totalorder %s25, 7
      %p60 = por %p58, %p59
      %p62 = scmp.ne.s32.totalorder %s45, %s61
      %p63 = scmp.eq.s32.totalorder %s25, 0
      %p64 = por %p62, %p63
      %s65 = ssub.s32 %s27, %s34
      %s66 = ssub.s32 %s26, %s38
      %s67 = sor.u32 %s65, %s66
      %p68 = scmp.eq.s32.totalorder %s67, 0
      %s70 = sadd.s32 %s69, 1
      %s71 = scalar_select %p68, %s69, %s70
      %p74 = pneg %p68
      %p75 = scmp.eq.s32.totalorder %s19, 7
      %p76 = por %p74, %p75
      %p77 = scmp.ne.s32.totalorder %s69, %s72
      %p78 = scmp.eq.s32.totalorder %s19, 0
      %p79 = por %p77, %p78
      %p80 = scmp.ne.s32.totalorder %s69, %s72
      %p81 = scmp.eq.s32.totalorder %s24, 7
      %p82 = por %p80, %p81
      %p83 = scmp.ne.s32.totalorder %s72, %s73
      %p84 = scmp.eq.s32.totalorder %s24, 0
      %p85 = por %p83, %p84
      %p86 = scmp.ne.s32.totalorder %s72, %s73
      %p87 = scmp.eq.s32.totalorder %s25, 7
      %p88 = por %p86, %p87
      %p90 = scmp.ne.s32.totalorder %s73, %s89
      %p91 = scmp.eq.s32.totalorder %s25, 0
      %p92 = por %p90, %p91
      %s93 = ssub.s32 %s26, %s38
      %p94 = scmp.eq.s32.totalorder %s93, 0
      %s96 = sadd.s32 %s95, 1
      %s97 = scalar_select %p94, %s95, %s96
      %p100 = pneg %p94
      %p101 = scmp.eq.s32.totalorder %s19, 7
      %p102 = por %p100, %p101
      %p103 = scmp.ne.s32.totalorder %s95, %s98
      %p104 = scmp.eq.s32.totalorder %s19, 0
      %p105 = por %p103, %p104
      %p106 = scmp.ne.s32.totalorder %s95, %s98
      %p107 = scmp.eq.s32.totalorder %s24, 7
      %p108 = por %p106, %p107
      %p109 = scmp.ne.s32.totalorder %s98, %s99
      %p110 = scmp.eq.s32.totalorder %s24, 0
      %p111 = por %p109, %p110
      %p112 = scmp.ne.s32.totalorder %s98, %s99
      %p113 = scmp.eq.s32.totalorder %s25, 7
      %p114 = por %p112, %p113
      %p116 = scmp.ne.s32.totalorder %s99, %s115
      %p117 = scmp.eq.s32.totalorder %s25, 0
      %p118 = por %p116, %p117
      %s120 = sadd.s32 %s119, 1
      %p123 = scmp.eq.s32.totalorder %s19, 7
      %p124 = scmp.ne.s32.totalorder %s119, %s121
      %p125 = scmp.eq.s32.totalorder %s19, 0
      %p126 = por %p124, %p125
      %p127 = scmp.ne.s32.totalorder %s119, %s121
      %p128 = scmp.eq.s32.totalorder %s24, 7
      %p129 = por %p127, %p128
      %p130 = scmp.ne.s32.totalorder %s121, %s122
      %p131 = scmp.eq.s32.totalorder %s24, 0
      %p132 = por %p130, %p131
      %p133 = scmp.ne.s32.totalorder %s121, %s122
      %p134 = scmp.eq.s32.totalorder %s25, 7
      %p135 = por %p133, %p134
      %p137 = scmp.ne.s32.totalorder %s122, %s136
      %p138 = scmp.eq.s32.totalorder %s25, 0
      %p139 = por %p137, %p138
      %s140 = ssub.s32 %s26, %s38
      %p141 = scmp.eq.s32.totalorder %s140, 0
      %s143 = sadd.s32 %s142, 1
      %s144 = scalar_select %p141, %s142, %s143
      %p147 = pneg %p141
      %p148 = scmp.eq.s32.totalorder %s19, 7
      %p149 = por %p147, %p148
      %p150 = scmp.ne.s32.totalorder %s142, %s145
      %p151 = scmp.eq.s32.totalorder %s19, 0
      %p152 = por %p150, %p151
      %p153 = scmp.ne.s32.totalorder %s142, %s145
      %p154 = scmp.eq.s32.totalorder %s24, 7
      %p155 = por %p153, %p154
      %p156 = scmp.ne.s32.totalorder %s145, %s146
      %p157 = scmp.eq.s32.totalorder %s24, 0
      %p158 = por %p156, %p157
      %p159 = scmp.ne.s32.totalorder %s145, %s146
      %p160 = scmp.eq.s32.totalorder %s25, 7
      %p161 = por %p159, %p160
      %p163 = scmp.ne.s32.totalorder %s146, %s162
      %p164 = scmp.eq.s32.totalorder %s25, 0
      %p165 = por %p163, %p164
      %p166 = scmp.le.s32.totalorder 1, %s19
      %p167 = scmp.lt.s32.totalorder %s19, 9
      %p168 = pnand %p166, %p167
      %p169 = pneg %p168
      // Predicated region
      $region9: #{tpu_custom_call.1} parent=5 // pred_check
        _
      $region10: #{tpu_custom_call.1} parent=5 // pred_check_branch
        %171 = sbr.rel (%p168) target = $region12
      $region11: #{tpu_custom_call.1} parent=5 // pred_region
        %s172 = ssub.s32 %s19, 1
        // Predicated region
        $region13: #{tpu_custom_call.1} parent=11 // pred_check
          %p173 = pneg %p132
        $region14: #{tpu_custom_call.1} parent=11 // pred_check_branch
          %175 = sbr.rel (%p173) target = $region16
        $region15: #{tpu_custom_call.1} parent=11 // pred_region
          _
        $region16: #{tpu_custom_call.1} parent=11 // pred_fallthru
          _
      $region12: #{tpu_custom_call.1} parent=5 // pred_fallthru
        _
      %p176 = scmp.lt.s32.totalorder %s19, 8
      // Predicated region
      $region17: #{tpu_custom_call.1} parent=5 // pred_check
        %p177 = pneg %p176
      $region18: #{tpu_custom_call.1} parent=5 // pred_check_branch
        %179 = sbr.rel (%p177) target = $region20
      $region19: #{tpu_custom_call.1} parent=5 // pred_region
        // Predicated region
        $region21: #{tpu_custom_call.1} parent=19 // pred_check
          %p180 = pneg %p51
        $region22: #{tpu_custom_call.1} parent=19 // pred_check_branch
          %182 = sbr.rel (%p180) target = $region24
        $region23: #{tpu_custom_call.1} parent=19 // pred_region
          %s183 = sand.u32 %s41, 1
          %s184 = scalar_lea.sflag [#allocation4], %s183
          %s185 = sand.u32 %s41, 1
          %s186 = smul.addr %s185, 8
          %s187 = scalar_lea.vmem [#allocation3], %s186
          %s188 = smul.u32 2, %s27
          %s190 = ssub.s32 128, 128
          %191 = vsyncadd %s184, %s190
          %s192 = smul.addr %s188, 64
          %s193 = scalar_lea.hbm %s0, %s192
          %s195 = sshll.u32 %s187, 4
          %s196 = int_to_ptr.vmem [resolvable:$true] %s195
          %198 = dma.hbm_to_vmem [thread:$0]  %s193, 128, %s196, %s184
        $region24: #{tpu_custom_call.1} parent=19 // pred_fallthru
          _
        // Predicated region
        $region25: #{tpu_custom_call.1} parent=19 // pred_check
          %p199 = pneg %p79
        $region26: #{tpu_custom_call.1} parent=19 // pred_check_branch
          %201 = sbr.rel (%p199) target = $region28
        $region27: #{tpu_custom_call.1} parent=19 // pred_region
          %s202 = sand.u32 %s19, 1
          %s203 = scalar_lea.sflag [#allocation7], %s202
          %s204 = sand.u32 %s69, 1
          %s205 = smul.addr %s204, 512
          %s206 = scalar_lea.vmem [#allocation6], %s205
          %s207 = smul.u32 32, %s27
          %s208 = smul.u32 4, %s26
          %s210 = ssub.s32 8192, 8192
          %211 = vsyncadd %s203, %s210
          %s212 = smul.addr %s207, 8
          %s213 = sadd.s32 %s208, %s212
          %s214 = smul.addr %s213, 64
          %s215 = scalar_lea.hbm %s1, %s214
          %s216 = sshll.u32 %s206, 4
          %s217 = int_to_ptr.vmem [resolvable:$true] %s216
          %222 = dma.hbm_to_vmem [thread:$0]  %s215, 8192, %s217, %s203, 512, 256, 16
        $region28: #{tpu_custom_call.1} parent=19 // pred_fallthru
          _
        // Predicated region
        $region29: #{tpu_custom_call.1} parent=19 // pred_check
          %p223 = pneg %p105
        $region30: #{tpu_custom_call.1} parent=19 // pred_check_branch
          %225 = sbr.rel (%p223) target = $region32
        $region31: #{tpu_custom_call.1} parent=19 // pred_region
          %s226 = sand.u32 %s19, 1
          %s227 = scalar_lea.sflag [#allocation7], %s226
          %s228 = sand.u32 %s95, 1
          %s229 = smul.addr %s228, 4
          %s230 = scalar_lea.vmem [#allocation8], %s229
          %s231 = smul.u32 4, %s26
          %s233 = ssub.s32 64, 64
          %234 = vsyncadd %s227, %s233
          %s235 = smul.addr %s231, 16
          %s236 = scalar_lea.hbm %s2, %s235
          %s238 = sshll.u32 %s230, 4
          %s239 = int_to_ptr.vmem [resolvable:$true] %s238
          %241 = dma.hbm_to_vmem [thread:$0]  %s236, 64, %s239, %s227
        $region32: #{tpu_custom_call.1} parent=19 // pred_fallthru
          _
      $region20: #{tpu_custom_call.1} parent=5 // pred_fallthru
        _
      %p242 = scmp.le.s32.totalorder 1, %s19
      %p243 = scmp.lt.s32.totalorder %s19, 9
      %p244 = pnand %p242, %p243
      %p245 = pneg %p244
      // Predicated region
      $region33: #{tpu_custom_call.1} parent=5 // pred_check
        _
      $region34: #{tpu_custom_call.1} parent=5 // pred_check_branch
        %247 = sbr.rel (%p244) target = $region36
      $region35: #{tpu_custom_call.1} parent=5 // pred_region
        %s248 = ssub.s32 %s19, 1
        %s249 = sand.u32 %s44, 1
        %s250 = scalar_lea.sflag [#allocation4], %s249
        %s251 = sand.u32 %s44, 1
        %s252 = smul.addr %s251, 8
        %s253 = scalar_lea.vmem [#allocation3], %s252
        // Predicated region
        $region37: #{tpu_custom_call.1} parent=35 // pred_check
          %p254 = pneg %p57
        $region38: #{tpu_custom_call.1} parent=35 // pred_check_branch
          %256 = sbr.rel (%p254) target = $region40
        $region39: #{tpu_custom_call.1} parent=35 // pred_region
          %257 = dma.done %s250, 128
        $region40: #{tpu_custom_call.1} parent=35 // pred_fallthru
          _
        %s258 = sand.u32 %s24, 1
        %s259 = scalar_lea.sflag [#allocation7], %s258
        %s260 = sand.u32 %s72, 1
        %s261 = smul.addr %s260, 512
        %s262 = scalar_lea.vmem [#allocation6], %s261
        // Predicated region
        $region41: #{tpu_custom_call.1} parent=35 // pred_check
          %p263 = pneg %p85
        $region42: #{tpu_custom_call.1} parent=35 // pred_check_branch
          %265 = sbr.rel (%p263) target = $region44
        $region43: #{tpu_custom_call.1} parent=35 // pred_region
          %266 = dma.done %s259, 8192
        $region44: #{tpu_custom_call.1} parent=35 // pred_fallthru
          _
        %s267 = sand.u32 %s24, 1
        %s268 = scalar_lea.sflag [#allocation7], %s267
        %s269 = sand.u32 %s98, 1
        %s270 = smul.addr %s269, 4
        %s271 = scalar_lea.vmem [#allocation8], %s270
        // Predicated region
        $region45: #{tpu_custom_call.1} parent=35 // pred_check
          %p272 = pneg %p111
        $region46: #{tpu_custom_call.1} parent=35 // pred_check_branch
          %274 = sbr.rel (%p272) target = $region48
        $region47: #{tpu_custom_call.1} parent=35 // pred_region
          %275 = dma.done %s268, 64
        $region48: #{tpu_custom_call.1} parent=35 // pred_fallthru
          _
        %s276 = sand.u32 %s44, 1
        %s277 = scalar_lea.sflag [#allocation4], %s276
        %s278 = sand.u32 %s44, 1
        %s279 = smul.addr %s278, 8
        %s280 = scalar_lea.vmem [#allocation3], %s279
        %p281 = pneg %p57
        %p282 = pneg %p54
        %s283 = sand.u32 %s24, 1
        %s284 = scalar_lea.sflag [#allocation7], %s283
        %s285 = sand.u32 %s72, 1
        %s286 = smul.addr %s285, 512
        %s287 = scalar_lea.vmem [#allocation6], %s286
        %p288 = pneg %p85
        %p289 = pneg %p82
        %s290 = sand.u32 %s24, 1
        %s291 = scalar_lea.sflag [#allocation7], %s290
        %s292 = sand.u32 %s98, 1
        %s293 = smul.addr %s292, 4
        %s294 = scalar_lea.vmem [#allocation8], %s293
        %p295 = pneg %p111
        %p296 = pneg %p108
        %p297 = pneg %p132
        %p298 = pneg %p129
        %p299 = pneg %p158
        %p300 = pneg %p155
        %s301 = sand.u32 %s145, 1
        %s302 = scalar_lea.sflag [#allocation5], %s301
        %s303 = sand.u32 %s145, 1
        %s304 = smul.addr %s303, 8
        %s305 = scalar_lea.vmem [#allocation9], %s304
        %s306 = smul.u32 2, %s29
        %s307 = smul.u32 32, %s29
        %s308 = smul.u32 4, %s28
        %s309 = smul.u32 4, %s28
        %p310 = scmp.eq.s32.totalorder %s29, 0
        // Predicated region
        $region49: #{tpu_custom_call.1} parent=35 // pred_check
          %p311 = pneg %p310
        $region50: #{tpu_custom_call.1} parent=35 // pred_check_branch
          %313 = sbr.rel (%p311) target = $region52
        $region51: #{tpu_custom_call.1} parent=35 // pred_region
          %314 = vst [vmem:[#allocation2] sm:$0xff] 0.0
          %315 = vst [vmem:[#allocation2 + $0x8] sm:$0xff] 0.0
          %316 = vst [vmem:[#allocation2 + $0x10] sm:$0xff] 0.0
          %317 = vst [vmem:[#allocation2 + $0x18] sm:$0xff] 0.0
        $region52: #{tpu_custom_call.1} parent=35 // pred_fallthru
          _
        %v318 = vld [vmem:[#allocation2] sm:$0xff]
        %v319 = vld [vmem:[#allocation2 + $0x8] sm:$0xff]
        %v320 = vld [vmem:[#allocation2 + $0x10] sm:$0xff]
        %v321 = vld [vmem:[#allocation2 + $0x18] sm:$0xff]
        %v322 = vld [vmem:[%s253] sm:$0xff]
        %v323 = vld [vmem:[%s262] sm:$0xff]
        %v324 = vld [vmem:[%s262 + $0x8] sm:$0xff]
        %v325 = vld [vmem:[%s262 + $0x10] sm:$0xff]
        %v326 = vld [vmem:[%s262 + $0x18] sm:$0xff]
        %v327 = vld [vmem:[%s262 + $0x20] sm:$0xff]
        %v328 = vld [vmem:[%s262 + $0x28] sm:$0xff]
        %v329 = vld [vmem:[%s262 + $0x30] sm:$0xff]
        %v330 = vld [vmem:[%s262 + $0x38] sm:$0xff]
        %v331 = vld [vmem:[%s262 + $0x40] sm:$0xff]
        %v332 = vld [vmem:[%s262 + $0x48] sm:$0xff]
        %v333 = vld [vmem:[%s262 + $0x50] sm:$0xff]
        %v334 = vld [vmem:[%s262 + $0x58] sm:$0xff]
        %v335 = vld [vmem:[%s262 + $0x60] sm:$0xff]
        %v336 = vld [vmem:[%s262 + $0x68] sm:$0xff]
        %v337 = vld [vmem:[%s262 + $0x70] sm:$0xff]
        %v338 = vld [vmem:[%s262 + $0x78] sm:$0xff]
        %v339 = vld [vmem:[%s262 + $0x80] sm:$0xff]
        %v340 = vld [vmem:[%s262 + $0x88] sm:$0xff]
        %v341 = vld [vmem:[%s262 + $0x90] sm:$0xff]
        %v342 = vld [vmem:[%s262 + $0x98] sm:$0xff]
        %v343 = vld [vmem:[%s262 + $0xa0] sm:$0xff]
        %v344 = vld [vmem:[%s262 + $0xa8] sm:$0xff]
        %v345 = vld [vmem:[%s262 + $0xb0] sm:$0xff]
        %v346 = vld [vmem:[%s262 + $0xb8] sm:$0xff]
        %v347 = vld [vmem:[%s262 + $0xc0] sm:$0xff]
        %v348 = vld [vmem:[%s262 + $0xc8] sm:$0xff]
        %v349 = vld [vmem:[%s262 + $0xd0] sm:$0xff]
        %v350 = vld [vmem:[%s262 + $0xd8] sm:$0xff]
        %v351 = vld [vmem:[%s262 + $0xe0] sm:$0xff]
        %v352 = vld [vmem:[%s262 + $0xe8] sm:$0xff]
        %v353 = vld [vmem:[%s262 + $0xf0] sm:$0xff]
        %v354 = vld [vmem:[%s262 + $0xf8] sm:$0xff]
        %v355 = vld [vmem:[%s262 + $0x100] sm:$0xff]
        %v356 = vld [vmem:[%s262 + $0x108] sm:$0xff]
        %v357 = vld [vmem:[%s262 + $0x110] sm:$0xff]
        %v358 = vld [vmem:[%s262 + $0x118] sm:$0xff]
        %v359 = vld [vmem:[%s262 + $0x120] sm:$0xff]
        %v360 = vld [vmem:[%s262 + $0x128] sm:$0xff]
        %v361 = vld [vmem:[%s262 + $0x130] sm:$0xff]
        %v362 = vld [vmem:[%s262 + $0x138] sm:$0xff]
        %v363 = vld [vmem:[%s262 + $0x140] sm:$0xff]
        %v364 = vld [vmem:[%s262 + $0x148] sm:$0xff]
        %v365 = vld [vmem:[%s262 + $0x150] sm:$0xff]
        %v366 = vld [vmem:[%s262 + $0x158] sm:$0xff]
        %v367 = vld [vmem:[%s262 + $0x160] sm:$0xff]
        %v368 = vld [vmem:[%s262 + $0x168] sm:$0xff]
        %v369 = vld [vmem:[%s262 + $0x170] sm:$0xff]
        %v370 = vld [vmem:[%s262 + $0x178] sm:$0xff]
        %v371 = vld [vmem:[%s262 + $0x180] sm:$0xff]
        %v372 = vld [vmem:[%s262 + $0x188] sm:$0xff]
        %v373 = vld [vmem:[%s262 + $0x190] sm:$0xff]
        %v374 = vld [vmem:[%s262 + $0x198] sm:$0xff]
        %v375 = vld [vmem:[%s262 + $0x1a0] sm:$0xff]
        %v376 = vld [vmem:[%s262 + $0x1a8] sm:$0xff]
        %v377 = vld [vmem:[%s262 + $0x1b0] sm:$0xff]
        %v378 = vld [vmem:[%s262 + $0x1b8] sm:$0xff]
        %v379 = vld [vmem:[%s262 + $0x1c0] sm:$0xff]
        %v380 = vld [vmem:[%s262 + $0x1c8] sm:$0xff]
        %v381 = vld [vmem:[%s262 + $0x1d0] sm:$0xff]
        %v382 = vld [vmem:[%s262 + $0x1d8] sm:$0xff]
        %v383 = vld [vmem:[%s262 + $0x1e0] sm:$0xff]
        %v384 = vld [vmem:[%s262 + $0x1e8] sm:$0xff]
        %v385 = vld [vmem:[%s262 + $0x1f0] sm:$0xff]
        %v386 = vld [vmem:[%s262 + $0x1f8] sm:$0xff]
        %v388 = vunpack.c.l.b16 %v322
        %v389 = vunpack.c.h.b16 %v322
        %v390 = vpack.c.b16 %v388, %v388
        %v391 = vpack.c.b16 %v389, %v389
        %v458 = vunpack.c.l.b16 %v323
        %v459 = vunpack.c.h.b16 %v323
        %v460 = vunpack.c.l.b16 %v324
        %v461 = vunpack.c.h.b16 %v324
        %v462 = vunpack.c.l.b16 %v325
        %v463 = vunpack.c.h.b16 %v325
        %v464 = vunpack.c.l.b16 %v326
        %v465 = vunpack.c.h.b16 %v326
        %v466 = vunpack.c.l.b16 %v327
        %v467 = vunpack.c.h.b16 %v327
        %v468 = vunpack.c.l.b16 %v328
        %v469 = vunpack.c.h.b16 %v328
        %v470 = vunpack.c.l.b16 %v329
        %v471 = vunpack.c.h.b16 %v329
        %v472 = vunpack.c.l.b16 %v330
        %v473 = vunpack.c.h.b16 %v330
        %v474 = vunpack.c.l.b16 %v331
        %v475 = vunpack.c.h.b16 %v331
        %v476 = vunpack.c.l.b16 %v332
        %v477 = vunpack.c.h.b16 %v332
        %v478 = vunpack.c.l.b16 %v333
        %v479 = vunpack.c.h.b16 %v333
        %v480 = vunpack.c.l.b16 %v334
        %v481 = vunpack.c.h.b16 %v334
        %v482 = vunpack.c.l.b16 %v335
        %v483 = vunpack.c.h.b16 %v335
        %v484 = vunpack.c.l.b16 %v336
        %v485 = vunpack.c.h.b16 %v336
        %v486 = vunpack.c.l.b16 %v337
        %v487 = vunpack.c.h.b16 %v337
        %v488 = vunpack.c.l.b16 %v338
        %v489 = vunpack.c.h.b16 %v338
        %v490 = vunpack.c.l.b16 %v339
        %v491 = vunpack.c.h.b16 %v339
        %v492 = vunpack.c.l.b16 %v340
        %v493 = vunpack.c.h.b16 %v340
        %v494 = vunpack.c.l.b16 %v341
        %v495 = vunpack.c.h.b16 %v341
        %v496 = vunpack.c.l.b16 %v342
        %v497 = vunpack.c.h.b16 %v342
        %v498 = vunpack.c.l.b16 %v343
        %v499 = vunpack.c.h.b16 %v343
        %v500 = vunpack.c.l.b16 %v344
        %v501 = vunpack.c.h.b16 %v344
        %v502 = vunpack.c.l.b16 %v345
        %v503 = vunpack.c.h.b16 %v345
        %v504 = vunpack.c.l.b16 %v346
        %v505 = vunpack.c.h.b16 %v346
        %v506 = vunpack.c.l.b16 %v347
        %v507 = vunpack.c.h.b16 %v347
        %v508 = vunpack.c.l.b16 %v348
        %v509 = vunpack.c.h.b16 %v348
        %v510 = vunpack.c.l.b16 %v349
        %v511 = vunpack.c.h.b16 %v349
        %v512 = vunpack.c.l.b16 %v350
        %v513 = vunpack.c.h.b16 %v350
        %v514 = vunpack.c.l.b16 %v351
        %v515 = vunpack.c.h.b16 %v351
        %v516 = vunpack.c.l.b16 %v352
        %v517 = vunpack.c.h.b16 %v352
        %v518 = vunpack.c.l.b16 %v353
        %v519 = vunpack.c.h.b16 %v353
        %v520 = vunpack.c.l.b16 %v354
        %v521 = vunpack.c.h.b16 %v354
        %v522 = vunpack.c.l.b16 %v355
        %v523 = vunpack.c.h.b16 %v355
        %v524 = vunpack.c.l.b16 %v356
        %v525 = vunpack.c.h.b16 %v356
        %v526 = vunpack.c.l.b16 %v357
        %v527 = vunpack.c.h.b16 %v357
        %v528 = vunpack.c.l.b16 %v358
        %v529 = vunpack.c.h.b16 %v358
        %v530 = vunpack.c.l.b16 %v359
        %v531 = vunpack.c.h.b16 %v359
        %v532 = vunpack.c.l.b16 %v360
        %v533 = vunpack.c.h.b16 %v360
        %v534 = vunpack.c.l.b16 %v361
        %v535 = vunpack.c.h.b16 %v361
        %v536 = vunpack.c.l.b16 %v362
        %v537 = vunpack.c.h.b16 %v362
        %v538 = vunpack.c.l.b16 %v363
        %v539 = vunpack.c.h.b16 %v363
        %v540 = vunpack.c.l.b16 %v364
        %v541 = vunpack.c.h.b16 %v364
        %v542 = vunpack.c.l.b16 %v365
        %v543 = vunpack.c.h.b16 %v365
        %v544 = vunpack.c.l.b16 %v366
        %v545 = vunpack.c.h.b16 %v366
        %v546 = vunpack.c.l.b16 %v367
        %v547 = vunpack.c.h.b16 %v367
        %v548 = vunpack.c.l.b16 %v368
        %v549 = vunpack.c.h.b16 %v368
        %v550 = vunpack.c.l.b16 %v369
        %v551 = vunpack.c.h.b16 %v369
        %v552 = vunpack.c.l.b16 %v370
        %v553 = vunpack.c.h.b16 %v370
        %v554 = vunpack.c.l.b16 %v371
        %v555 = vunpack.c.h.b16 %v371
        %v556 = vunpack.c.l.b16 %v372
        %v557 = vunpack.c.h.b16 %v372
        %v558 = vunpack.c.l.b16 %v373
        %v559 = vunpack.c.h.b16 %v373
        %v560 = vunpack.c.l.b16 %v374
        %v561 = vunpack.c.h.b16 %v374
        %v562 = vunpack.c.l.b16 %v375
        %v563 = vunpack.c.h.b16 %v375
        %v564 = vunpack.c.l.b16 %v376
        %v565 = vunpack.c.h.b16 %v376
        %v566 = vunpack.c.l.b16 %v377
        %v567 = vunpack.c.h.b16 %v377
        %v568 = vunpack.c.l.b16 %v378
        %v569 = vunpack.c.h.b16 %v378
        %v570 = vunpack.c.l.b16 %v379
        %v571 = vunpack.c.h.b16 %v379
        %v572 = vunpack.c.l.b16 %v380
        %v573 = vunpack.c.h.b16 %v380
        %v574 = vunpack.c.l.b16 %v381
        %v575 = vunpack.c.h.b16 %v381
        %v576 = vunpack.c.l.b16 %v382
        %v577 = vunpack.c.h.b16 %v382
        %v578 = vunpack.c.l.b16 %v383
        %v579 = vunpack.c.h.b16 %v383
        %v580 = vunpack.c.l.b16 %v384
        %v581 = vunpack.c.h.b16 %v384
        %v582 = vunpack.c.l.b16 %v385
        %v583 = vunpack.c.h.b16 %v385
        %v584 = vunpack.c.l.b16 %v386
        %v585 = vunpack.c.h.b16 %v386
        %v586 = vpack.c.b16 %v462, %v458
        %v587 = vpack.c.b16 %v463, %v459
        %v588 = vpack.c.b16 %v464, %v460
        %v589 = vpack.c.b16 %v465, %v461
        %v590 = vpack.c.b16 %v470, %v466
        %v591 = vpack.c.b16 %v471, %v467
        %v592 = vpack.c.b16 %v472, %v468
        %v593 = vpack.c.b16 %v473, %v469
        %v594 = vpack.c.b16 %v478, %v474
        %v595 = vpack.c.b16 %v479, %v475
        %v596 = vpack.c.b16 %v480, %v476
        %v597 = vpack.c.b16 %v481, %v477
        %v598 = vpack.c.b16 %v486, %v482
        %v599 = vpack.c.b16 %v487, %v483
        %v600 = vpack.c.b16 %v488, %v484
        %v601 = vpack.c.b16 %v489, %v485
        %v602 = vpack.c.b16 %v494, %v490
        %v603 = vpack.c.b16 %v495, %v491
        %v604 = vpack.c.b16 %v496, %v492
        %v605 = vpack.c.b16 %v497, %v493
        %v606 = vpack.c.b16 %v502, %v498
        %v607 = vpack.c.b16 %v503, %v499
        %v608 = vpack.c.b16 %v504, %v500
        %v609 = vpack.c.b16 %v505, %v501
        %v610 = vpack.c.b16 %v510, %v506
        %v611 = vpack.c.b16 %v511, %v507
        %v612 = vpack.c.b16 %v512, %v508
        %v613 = vpack.c.b16 %v513, %v509
        %v614 = vpack.c.b16 %v518, %v514
        %v615 = vpack.c.b16 %v519, %v515
        %v616 = vpack.c.b16 %v520, %v516
        %v617 = vpack.c.b16 %v521, %v517
        %v618 = vpack.c.b16 %v526, %v522
        %v619 = vpack.c.b16 %v527, %v523
        %v620 = vpack.c.b16 %v528, %v524
        %v621 = vpack.c.b16 %v529, %v525
        %v622 = vpack.c.b16 %v534, %v530
        %v623 = vpack.c.b16 %v535, %v531
        %v624 = vpack.c.b16 %v536, %v532
        %v625 = vpack.c.b16 %v537, %v533
        %v626 = vpack.c.b16 %v542, %v538
        %v627 = vpack.c.b16 %v543, %v539
        %v628 = vpack.c.b16 %v544, %v540
        %v629 = vpack.c.b16 %v545, %v541
        %v630 = vpack.c.b16 %v550, %v546
        %v631 = vpack.c.b16 %v551, %v547
        %v632 = vpack.c.b16 %v552, %v548
        %v633 = vpack.c.b16 %v553, %v549
        %v634 = vpack.c.b16 %v558, %v554
        %v635 = vpack.c.b16 %v559, %v555
        %v636 = vpack.c.b16 %v560, %v556
        %v637 = vpack.c.b16 %v561, %v557
        %v638 = vpack.c.b16 %v566, %v562
        %v639 = vpack.c.b16 %v567, %v563
        %v640 = vpack.c.b16 %v568, %v564
        %v641 = vpack.c.b16 %v569, %v565
        %v642 = vpack.c.b16 %v574, %v570
        %v643 = vpack.c.b16 %v575, %v571
        %v644 = vpack.c.b16 %v576, %v572
        %v645 = vpack.c.b16 %v577, %v573
        %v646 = vpack.c.b16 %v582, %v578
        %v647 = vpack.c.b16 %v583, %v579
        %v648 = vpack.c.b16 %v584, %v580
        %v649 = vpack.c.b16 %v585, %v581
        %714 = vmatprep.subr.bf16.mxu0 %v587
        %715 = vmatpush1.bf16.msra.mxu0 %v586
        %716 = vmatprep.subr.bf16.mxu0 %v591
        %717 = vmatpush1.bf16.msra.mxu0 %v590
        %718 = vmatprep.subr.bf16.mxu0 %v595
        %719 = vmatpush1.bf16.msra.mxu0 %v594
        %720 = vmatprep.subr.bf16.mxu0 %v599
        %721 = vmatpush1.bf16.msra.mxu0 %v598
        %722 = vmatprep.subr.bf16.mxu0 %v603
        %723 = vmatpush1.bf16.msra.mxu0 %v602
        %724 = vmatprep.subr.bf16.mxu0 %v607
        %725 = vmatpush1.bf16.msra.mxu0 %v606
        %726 = vmatprep.subr.bf16.mxu0 %v611
        %727 = vmatpush1.bf16.msra.mxu0 %v610
        %728 = vmatprep.subr.bf16.mxu0 %v615
        %729 = vmatpush1.bf16.msra.mxu0 %v614
        %730 = vmatprep.subr.bf16.mxu0 %v619
        %731 = vmatpush1.bf16.msra.mxu0 %v618
        %732 = vmatprep.subr.bf16.mxu0 %v623
        %733 = vmatpush1.bf16.msra.mxu0 %v622
        %734 = vmatprep.subr.bf16.mxu0 %v627
        %735 = vmatpush1.bf16.msra.mxu0 %v626
        %736 = vmatprep.subr.bf16.mxu0 %v631
        %737 = vmatpush1.bf16.msra.mxu0 %v630
        %738 = vmatprep.subr.bf16.mxu0 %v635
        %739 = vmatpush1.bf16.msra.mxu0 %v634
        %740 = vmatprep.subr.bf16.mxu0 %v639
        %741 = vmatpush1.bf16.msra.mxu0 %v638
        %742 = vmatprep.subr.bf16.mxu0 %v643
        %743 = vmatpush1.bf16.msra.mxu0 %v642
        %744 = vmatprep.subr.bf16.mxu0 %v647
        %745 = vmatpush1.bf16.msra.mxu0 %v646
        %746 = vmatprep.mubr.bf16.mxu0 %v391
        %747 = vmatmul.mubr.bf16.gmra.mrb[0].mxu0 %v390
        %v748 = vpop.f32.mrb[0].mxu0
        %v749 = vadd.f32 0.0, %v748
        %v750 = vpop.f32.mrb[0].mxu0
        %v751 = vadd.f32 0.0, %v750
        %v752 = vpop.f32.mrb[0].mxu0
        %v753 = vpop.f32.mrb[0].mxu0
        %754 = vdwg.mxu0
        %755 = vmatprep.subr.bf16.mxu0 %v589
        %756 = vmatpush1.bf16.msra.mxu0 %v588
        %757 = vmatprep.subr.bf16.mxu0 %v593
        %758 = vmatpush1.bf16.msra.mxu0 %v592
        %759 = vmatprep.subr.bf16.mxu0 %v597
        %760 = vmatpush1.bf16.msra.mxu0 %v596
        %761 = vmatprep.subr.bf16.mxu0 %v601
        %762 = vmatpush1.bf16.msra.mxu0 %v600
        %763 = vmatprep.subr.bf16.mxu0 %v605
        %764 = vmatpush1.bf16.msra.mxu0 %v604
        %765 = vmatprep.subr.bf16.mxu0 %v609
        %766 = vmatpush1.bf16.msra.mxu0 %v608
        %767 = vmatprep.subr.bf16.mxu0 %v613
        %768 = vmatpush1.bf16.msra.mxu0 %v612
        %769 = vmatprep.subr.bf16.mxu0 %v617
        %770 = vmatpush1.bf16.msra.mxu0 %v616
        %771 = vmatprep.subr.bf16.mxu0 %v621
        %772 = vmatpush1.bf16.msra.mxu0 %v620
        %773 = vmatprep.subr.bf16.mxu0 %v625
        %774 = vmatpush1.bf16.msra.mxu0 %v624
        %775 = vmatprep.subr.bf16.mxu0 %v629
        %776 = vmatpush1.bf16.msra.mxu0 %v628
        %777 = vmatprep.subr.bf16.mxu0 %v633
        %778 = vmatpush1.bf16.msra.mxu0 %v632
        %779 = vmatprep.subr.bf16.mxu0 %v637
        %780 = vmatpush1.bf16.msra.mxu0 %v636
        %781 = vmatprep.subr.bf16.mxu0 %v641
        %782 = vmatpush1.bf16.msra.mxu0 %v640
        %783 = vmatprep.subr.bf16.mxu0 %v645
        %784 = vmatpush1.bf16.msra.mxu0 %v644
        %785 = vmatprep.subr.bf16.mxu0 %v649
        %786 = vmatpush1.bf16.msra.mxu0 %v648
        %787 = vmatprep.mubr.bf16.mxu0 %v391
        %788 = vmatmul.mubr.bf16.gmra.mrb[0].mxu0 %v390
        %v789 = vpop.f32.mrb[0].mxu0
        %v790 = vadd.f32 0.0, %v789
        %v791 = vpop.f32.mrb[0].mxu0
        %v792 = vadd.f32 0.0, %v791
        %v793 = vpop.f32.mrb[0].mxu0
        %v794 = vpop.f32.mrb[0].mxu0
        %795 = vdwg.mxu0
        %v796 = vadd.f32 %v318, %v749
        %v797 = vadd.f32 %v319, %v751
        %v798 = vadd.f32 %v320, %v790
        %v799 = vadd.f32 %v321, %v792
        %800 = vst [vmem:[#allocation2] sm:$0xff] %v796
        %801 = vst [vmem:[#allocation2 + $0x8] sm:$0xff] %v797
        %802 = vst [vmem:[#allocation2 + $0x10] sm:$0xff] %v798
        %803 = vst [vmem:[#allocation2 + $0x18] sm:$0xff] %v799
        %p804 = scmp.eq.s32.totalorder %s29, 3
        // Predicated region
        $region53: #{tpu_custom_call.1} parent=35 // pred_check
          %p805 = pneg %p804
        $region54: #{tpu_custom_call.1} parent=35 // pred_check_branch
          %807 = sbr.rel (%p805) target = $region56
        $region55: #{tpu_custom_call.1} parent=35 // pred_region
          %v808 = vld [vmem:[#allocation2] sm:$0xff]
          %v809 = vld [vmem:[#allocation2 + $0x8] sm:$0xff]
          %v810 = vld [vmem:[#allocation2 + $0x10] sm:$0xff]
          %v811 = vld [vmem:[#allocation2 + $0x18] sm:$0xff]
          %v812 = vld [vmem:[%s271] sm:$0xf]
          %v814 = vlaneseq
          %v815 = vshrl.u32 %v814, 7
          %v816 = vsub.s32 0, %v815
          %v817 = vrot.slane %v812, %v816
          %v818 = vlaneseq
          %v819 = vshrl.u32 %v818, 7
          %v820 = vsub.s32 1, %v819
          %v821 = vrot.slane %v812, %v820
          %v822 = vlaneseq
          %v823 = vshrl.u32 %v822, 7
          %v824 = vsub.s32 2, %v823
          %v825 = vrot.slane %v812, %v824
          %v826 = vlaneseq
          %v827 = vshrl.u32 %v826, 7
          %v828 = vsub.s32 3, %v827
          %v829 = vrot.slane %v812, %v828
          %v834 = vadd.f32 %v808, %v817
          %v835 = vadd.f32 %v809, %v821
          %v836 = vadd.f32 %v810, %v825
          %v837 = vadd.f32 %v811, %v829
          %v838 = vld [vmem:[%s3] sm:$0xff]
          %840 = vset.pattern.permute.xlu0 0
          %841 = vperm.xlu0 %840, %v838
          %v842 = vpop.permute.xlu0 %841
          %v844 = vmul.f32 %v842, %v834
          %845 = vset.pattern.permute.xlu0 1
          %846 = vperm.xlu0 %845, %v838
          %v847 = vpop.permute.xlu0 %846
          %v849 = vmul.f32 %v847, %v835
          %v850 = vadd.f32 %v844, %v849
          %851 = vset.pattern.permute.xlu0 2
          %852 = vperm.xlu0 %851, %v838
          %v853 = vpop.permute.xlu0 %852
          %v855 = vmul.f32 %v853, %v836
          %v856 = vadd.f32 %v850, %v855
          %857 = vset.pattern.permute.xlu0 3
          %858 = vperm.xlu0 %857, %v838
          %v859 = vpop.permute.xlu0 %858
          %v861 = vmul.f32 %v859, %v837
          %v862 = vadd.f32 %v856, %v861
          %863 = vst [vmem:[%s305] sm:$0xff] %v862
        $region56: #{tpu_custom_call.1} parent=35 // pred_fallthru
          _
        %s864 = sand.u32 %s145, 1
        %s865 = scalar_lea.sflag [#allocation5], %s864
        %s866 = sand.u32 %s145, 1
        %s867 = smul.addr %s866, 8
        %s868 = scalar_lea.vmem [#allocation9], %s867
        // Predicated region
        $region57: #{tpu_custom_call.1} parent=35 // pred_check
          %p869 = pneg %p155
        $region58: #{tpu_custom_call.1} parent=35 // pred_check_branch
          %871 = sbr.rel (%p869) target = $region60
        $region59: #{tpu_custom_call.1} parent=35 // pred_region
          %s873 = ssub.s32 128, 128
          %874 = vsyncadd %s865, %s873
          %s875 = smul.addr %s28, 128
          %s876 = scalar_lea.hbm %s4, %s875
          %s878 = sshll.u32 %s868, 4
          %s879 = int_to_ptr.vmem [resolvable:$true] %s878
          %881 = dma.vmem_to_hbm [thread:$0]  %s879, 128, %s876, %s865
        $region60: #{tpu_custom_call.1} parent=35 // pred_fallthru
          _
      $region36: #{tpu_custom_call.1} parent=5 // pred_fallthru
        _
      %p882 = scmp.le.s32.totalorder 2, %s19
      // Predicated region
      $region61: #{tpu_custom_call.1} parent=5 // pred_check
        %p883 = pneg %p882
      $region62: #{tpu_custom_call.1} parent=5 // pred_check_branch
        %885 = sbr.rel (%p883) target = $region64
      $region63: #{tpu_custom_call.1} parent=5 // pred_region
        %s886 = ssub.s32 %s19, 2
        // Predicated region
        $region65: #{tpu_custom_call.1} parent=63 // pred_check
          %p887 = pneg %p161
        $region66: #{tpu_custom_call.1} parent=63 // pred_check_branch
          %889 = sbr.rel (%p887) target = $region68
        $region67: #{tpu_custom_call.1} parent=63 // pred_region
          %s890 = sand.u32 %s146, 1
          %s891 = scalar_lea.sflag [#allocation5], %s890
          %s892 = sand.u32 %s146, 1
          %s893 = smul.addr %s892, 8
          %s894 = scalar_lea.vmem [#allocation9], %s893
          %895 = dma.done %s891, 128
        $region68: #{tpu_custom_call.1} parent=63 // pred_fallthru
          _
      $region64: #{tpu_custom_call.1} parent=5 // pred_fallthru
        _
    $region6: #{tpu_custom_call.1} parent=1 // loop_footer
      %s23 = sadd.s32 1, %s19
    $region7: #{tpu_custom_call.1} parent=1 // loop_footer_branch
      %18 = sbr.rel target = $region3
    $region8: #{tpu_custom_call.1} parent=1 // loop_exit
      _
    %896 = vsyncpa [#allocation4], 1
    %s897 = scalar_lea.sflag [#allocation4], 1
    %898 = vsyncpa %s897, 1
    %899 = vsyncpa [#allocation7], 1
    %s900 = scalar_lea.sflag [#allocation7], 1
    %901 = vsyncpa %s900, 1
    %902 = vsyncpa [#allocation5], 1
    %s903 = scalar_lea.sflag [#allocation5], 1
    %904 = vsyncpa %s903, 1

</llo_original>
